<compile_context>
chip_gen: v5e
topology: v5e:2x2
jax: 0.10.0
libtpu: 0.0.40
codegen_flags: <defaults>
</compile_context>

<pallas_src>
import jax
import jax.numpy as jnp
from jax.experimental import pallas as pl
from jax.experimental.pallas import tpu as pltpu


def similarity_kernel(l_ref, r_ref, wh_ref, bias_ref, wpb_ref, pred_ref):
    l = l_ref[...]                                   # (TB, M)
    r = r_ref[...]                                   # (TB, M)
    mulmat = l * r                                   # lvec * rvec
    absmat = jnp.abs(l - r)                          # |lvec - rvec|

    # h = [mulmat | absmat] @ Wh.T + bh  -> two K=M matmuls, f32 accumulation
    h = (jnp.dot(mulmat, wh_ref[0], preferred_element_type=jnp.float32)
         + jnp.dot(absmat, wh_ref[1], preferred_element_type=jnp.float32))
    h = jax.nn.sigmoid(h + bias_ref[0:1, :])         # (TB, H), f32

    # p = h @ wp.T + bp  -> VPU multiply + lane reduction (avoid N=1 matmul)
    p = jnp.sum(h * bias_ref[1:2, :], axis=-1)       # (TB,)
    pred = jax.nn.sigmoid(p + wpb_ref[0])            # (TB,)
    pred_ref[...] = pred[None, :].astype(pred_ref.dtype)   # lane-dense (1, TB)


def _pick_tile(B, M, act_itemsize):
    """Rows per grid step.

    Small B: one full-batch block (nothing to pipeline).  Large B: 256 rows
    by default (grid >= 2 -> pipeline overlap + v7x megacore), bumped to 512
    only if 256 rows would give a per-step activation DMA < ~256 KiB, and
    shrunk if the double-buffered activation working set (2 operands x 2
    buffers x tb x M) would stress the default scoped VMEM on v5e/v7x.
    Tiles are multiples of 128 so the (tb, M) and (1, tb) blocks stay
    (8,128)-legal even with a ragged (masked) final block.
    """
    if B <= 256:
        return B
    per_step_bytes = 2 * 256 * M * act_itemsize          # lvec + rvec per step
    tb = 256 if per_step_bytes >= (256 << 10) else 512
    if tb >= B:
        return B
    while tb > 128 and 4 * tb * M * act_itemsize > (8 << 20):
        tb //= 2
    return tb


def pack_params(wh_w, wh_b, wp_w, wp_b, *, param_dtype=None):
    """One-off parameter packing (hoisted out of the per-call path).

    wh_w: (H, 2M), wh_b: (H,), wp_w: (1, H), wp_b: (1,).
    Returns (wh_pack (2,M,H), bias_pack (2,H) f32, wpb (1,) f32 SMEM scalar).
    """
    wh_w = jnp.asarray(wh_w)
    H, twoM = wh_w.shape
    M = twoM // 2
    if param_dtype is None:
        param_dtype = wh_w.dtype
    # Two K=M halves of Wh, pre-transposed -> no in-kernel concat/relayout.
    wh_pack = jnp.stack([wh_w[:, :M].T, wh_w[:, M:].T], axis=0).astype(param_dtype)
    # Row 0: wh bias; row 1: wp weight row (consumed by the VPU second linear).
    bias_pack = jnp.stack([jnp.asarray(wh_b).reshape(H).astype(jnp.float32),
                           jnp.asarray(wp_w).reshape(H).astype(jnp.float32)], axis=0)
    wpb = jnp.asarray(wp_b).reshape(1).astype(jnp.float32)
    return wh_pack, bias_pack, wpb


def similarity(lvec, rvec, packed_params):
    """lvec, rvec: (B, mem_dim) (f32 or bf16). Returns (B, 1) f32 predictions."""
    wh_pack, bias_pack, wpb = packed_params
    lvec = jnp.asarray(lvec)
    rvec = jnp.asarray(rvec)
    B, M = lvec.shape
    H = wh_pack.shape[2]
    tb = _pick_tile(B, M, jnp.dtype(lvec.dtype).itemsize)

    out = pl.pallas_call(
        similarity_kernel,
        out_shape=jax.ShapeDtypeStruct((1, B), jnp.float32),
        grid_spec=pltpu.PrefetchScalarGridSpec(
            num_scalar_prefetch=0,
            grid=(pl.cdiv(B, tb),),
            in_specs=[
                pl.BlockSpec((tb, M), lambda i: (i, 0)),        # lvec (streamed)
                pl.BlockSpec((tb, M), lambda i: (i, 0)),        # rvec (streamed)
                pl.BlockSpec((2, M, H), lambda i: (0, 0, 0)),   # packed Wh halves (resident)
                pl.BlockSpec((2, H), lambda i: (0, 0)),         # [wh bias ; wp weight row]
                pl.BlockSpec(memory_space=pltpu.MemorySpace.SMEM),  # wp bias scalar
            ],
            out_specs=pl.BlockSpec((1, tb), lambda i: (0, i)),  # lane-dense output
        ),
        compiler_params=pltpu.CompilerParams(
            dimension_semantics=("parallel",)),
    )(lvec, rvec, wh_pack, bias_pack, wpb)

    return out.reshape(B, 1)


def _init_linear(key, out_features, in_features):
    # Deterministic stand-in for nn.Linear default init: U(-1/sqrt(fan_in), +...)
    kw, kb = jax.random.split(key)
    bound = 1.0 / (in_features ** 0.5)
    w = jax.random.uniform(kw, (out_features, in_features), jnp.float32,
                           -bound, bound)
    b = jax.random.uniform(kb, (out_features,), jnp.float32, -bound, bound)
    return w, b


if __name__ == "__main__":
    B, mem_dim, hid_dim = 8, 32, 32

    key = jax.random.PRNGKey(0)
    k_l, k_r, k_wh, k_wp = jax.random.split(key, 4)

    lvec = jax.random.normal(k_l, (B, mem_dim), jnp.float32)
    rvec = jax.random.normal(k_r, (B, mem_dim), jnp.float32)

    wh_w, wh_b = _init_linear(k_wh, hid_dim, 2 * mem_dim)   # wh: Linear(2M -> H)
    wp_w, wp_b = _init_linear(k_wp, 1, hid_dim)             # wp: Linear(H -> 1)

    # Plain-JAX reference of the same forward pass.
    vec = jnp.concatenate([lvec * rvec, jnp.abs(lvec - rvec)], axis=1)
    h_ref = jax.nn.sigmoid(vec @ wh_w.T + wh_b)
    ref = jax.nn.sigmoid(h_ref @ wp_w.T + wp_b)

    # f32 path (parameters packed once, reused across calls).
    params_f32 = pack_params(wh_w, wh_b, wp_w, wp_b)
    pred = jax.block_until_ready(similarity(lvec, rvec, params_f32))
    assert pred.shape == (B, 1)
    assert jnp.allclose(pred, ref, atol=1e-5, rtol=1e-5)

    # bf16 activation/weight path (halves the HBM stream for the memory-bound
    # large-B regime); accumulation, biases and sigmoids stay f32.
    params_bf16 = pack_params(wh_w, wh_b, wp_w, wp_b, param_dtype=jnp.bfloat16)
    pred_bf16 = jax.block_until_ready(
        similarity(lvec.astype(jnp.bfloat16), rvec.astype(jnp.bfloat16),
                   params_bf16))
    assert pred_bf16.shape == (B, 1)
    assert jnp.allclose(pred_bf16, ref, atol=2e-2, rtol=2e-2)

    print("KERNEL_OK")
</pallas_src>

<mosaic_0001>
module attributes {stable_mosaic.version = 11 : i64} {
  func.func @similarity_kernel(%arg0: i32, %arg1: memref<8x32xf32, #tpu.memory_space<vmem>>, %arg2: memref<8x32xf32, #tpu.memory_space<vmem>>, %arg3: memref<2x32x32xf32, #tpu.memory_space<vmem>>, %arg4: memref<2x32xf32, #tpu.memory_space<vmem>>, %arg5: memref<1xf32, #tpu.memory_space<smem>>, %arg6: memref<1x8xf32, #tpu.memory_space<vmem>>) attributes {dimension_semantics = [#tpu.dimension_semantics<parallel>], iteration_bounds = array<i64: 1>, scalar_prefetch = 0 : i64, scratch_operands = 0 : i64, tpu.core_type = #tpu.core_type<tc>, window_params = [{transform_indices = @transform_0, window_bounds = array<i64: 8, 32>}, {transform_indices = @transform_1, window_bounds = array<i64: 8, 32>}, {pipeline_mode = #tpu.pipeline_mode<synchronous>, transform_indices = @transform_2, window_bounds = array<i64: 2, 32, 32>}, {pipeline_mode = #tpu.pipeline_mode<synchronous>, transform_indices = @transform_3, window_bounds = array<i64: 2, 32>}, {transform_indices = @transform_4, window_bounds = array<i64: 1>}, {transform_indices = @transform_5, window_bounds = array<i64: 1, 8>}]} {
    %c0 = arith.constant 0 : index
    %c0_0 = arith.constant 0 : index
    %0 = vector.load %arg1[%c0, %c0_0] : memref<8x32xf32, #tpu.memory_space<vmem>>, vector<8x32xf32>
    %c0_1 = arith.constant 0 : index
    %c0_2 = arith.constant 0 : index
    %1 = vector.load %arg2[%c0_1, %c0_2] : memref<8x32xf32, #tpu.memory_space<vmem>>, vector<8x32xf32>
    %2 = arith.mulf %0, %1 : vector<8x32xf32>
    %3 = arith.subf %0, %1 : vector<8x32xf32>
    %4 = math.absf %3 : vector<8x32xf32>
    %c0_3 = arith.constant 0 : index
    %c0_4 = arith.constant 0 : index
    %c0_5 = arith.constant 0 : index
    %5 = vector.load %arg3[%c0_3, %c0_4, %c0_5] : memref<2x32x32xf32, #tpu.memory_space<vmem>>, vector<1x32x32xf32>
    %6 = vector.shape_cast %5 : vector<1x32x32xf32> to vector<32x32xf32>
    %cst = arith.constant dense<0.000000e+00> : vector<8x32xf32>
    %7 = tpu.matmul %2, %6, %cst {dimension_numbers = #tpu.dot_dimension_numbers<[1], [0], [0], [1], [0, 0, 1, 1], [], []>} : vector<8x32xf32>, vector<32x32xf32>, vector<8x32xf32> -> vector<8x32xf32>
    %c1 = arith.constant 1 : index
    %c0_6 = arith.constant 0 : index
    %c0_7 = arith.constant 0 : index
    %8 = vector.load %arg3[%c1, %c0_6, %c0_7] : memref<2x32x32xf32, #tpu.memory_space<vmem>>, vector<1x32x32xf32>
    %9 = vector.shape_cast %8 : vector<1x32x32xf32> to vector<32x32xf32>
    %cst_8 = arith.constant dense<0.000000e+00> : vector<8x32xf32>
    %10 = tpu.matmul %4, %9, %cst_8 {dimension_numbers = #tpu.dot_dimension_numbers<[1], [0], [0], [1], [0, 0, 1, 1], [], []>} : vector<8x32xf32>, vector<32x32xf32>, vector<8x32xf32> -> vector<8x32xf32>
    %11 = arith.addf %7, %10 : vector<8x32xf32>
    %c0_9 = arith.constant 0 : index
    %c0_10 = arith.constant 0 : index
    %12 = vector.load %arg4[%c0_9, %c0_10] : memref<2x32xf32, #tpu.memory_space<vmem>>, vector<1x32xf32>
    %13 = vector.broadcast %12 : vector<1x32xf32> to vector<8x32xf32>
    %14 = arith.addf %11, %13 : vector<8x32xf32>
    %15 = arith.negf %14 : vector<8x32xf32>
    %16 = math.exp %15 : vector<8x32xf32>
    %cst_11 = arith.constant 1.000000e+00 : f32
    %17 = vector.broadcast %cst_11 : f32 to vector<8x32xf32>
    %18 = arith.addf %17, %16 : vector<8x32xf32>
    %19 = arith.divf %17, %18 : vector<8x32xf32>
    %c1_12 = arith.constant 1 : index
    %c0_13 = arith.constant 0 : index
    %20 = vector.load %arg4[%c1_12, %c0_13] : memref<2x32xf32, #tpu.memory_space<vmem>>, vector<1x32xf32>
    %21 = vector.broadcast %20 : vector<1x32xf32> to vector<8x32xf32>
    %22 = arith.mulf %19, %21 : vector<8x32xf32>
    %cst_14 = arith.constant dense<0.000000e+00> : vector<8xf32>
    %23 = vector.multi_reduction <add>, %22, %cst_14 [1] : vector<8x32xf32> to vector<8xf32>
    %c0_15 = arith.constant 0 : index
    %24 = memref.load %arg5[%c0_15] : memref<1xf32, #tpu.memory_space<smem>>
    %25 = vector.broadcast %24 : f32 to vector<8xf32>
    %26 = arith.addf %23, %25 : vector<8xf32>
    %27 = arith.negf %26 : vector<8xf32>
    %28 = math.exp %27 : vector<8xf32>
    %cst_16 = arith.constant 1.000000e+00 : f32
    %29 = vector.broadcast %cst_16 : f32 to vector<8xf32>
    %30 = arith.addf %29, %28 : vector<8xf32>
    %31 = arith.divf %29, %30 : vector<8xf32>
    %32 = vector.shape_cast %31 : vector<8xf32> to vector<1x8xf32>
    %c0_17 = arith.constant 0 : index
    %c0_18 = arith.constant 0 : index
    %33 = vector.load %arg6[%c0_17, %c0_18] : memref<1x8xf32, #tpu.memory_space<vmem>>, vector<1x8xf32>
    tpu.vector_store %arg6[%c0_17, %c0_18], %32 {strides = array<i32>} : memref<1x8xf32, #tpu.memory_space<vmem>>, vector<1x8xf32>,
    return
  }
  func.func @transform_0(%arg0: i32) -> (i32, i32) {
    %c0_i32 = arith.constant 0 : i32
    %c0_i32_0 = arith.constant 0 : i32
    return %arg0, %c0_i32 : i32, i32
  }
  func.func @transform_1(%arg0: i32) -> (i32, i32) {
    %c0_i32 = arith.constant 0 : i32
    %c0_i32_0 = arith.constant 0 : i32
    return %arg0, %c0_i32 : i32, i32
  }
  func.func @transform_2(%arg0: i32) -> (i32, i32, i32) {
    %c0_i32 = arith.constant 0 : i32
    %c0_i32_0 = arith.constant 0 : i32
    %c0_i32_1 = arith.constant 0 : i32
    %c0_i32_2 = arith.constant 0 : i32
    return %c0_i32, %c0_i32_0, %c0_i32_1 : i32, i32, i32
  }
  func.func @transform_3(%arg0: i32) -> (i32, i32) {
    %c0_i32 = arith.constant 0 : i32
    %c0_i32_0 = arith.constant 0 : i32
    %c0_i32_1 = arith.constant 0 : i32
    return %c0_i32, %c0_i32_0 : i32, i32
  }
  func.func @transform_4(%arg0: i32) -> i32 {
    %c0_i32 = arith.constant 0 : i32
    %c0_i32_0 = arith.constant 0 : i32
    return %c0_i32 : i32
  }
  func.func @transform_5(%arg0: i32) -> (i32, i32) {
    %c0_i32 = arith.constant 0 : i32
    %c0_i32_0 = arith.constant 0 : i32
    return %c0_i32, %arg0 : i32, i32
  }
}

</mosaic_0001>

<llo_original>
// kernel: tpu_custom_call.1
$region0: #{tpu_custom_call.1}
  #allocation0 [shape = 'u32[]', space=smem, size = 0x4, offset = 0x4, fixed_abs, tag = 'smem constant byte address 0x4 - core index']
  #allocation1 [shape = 'u32[72,128]{1,0:T(1,128)}', space=vmem, size = 0x9000, scoped, tag = 'internal scratch']
  #allocation2 [shape = 'f32[1]{0:T(128)S(6)}', space=smem, size = 0x200, scoped, tag = 'scoped memory for tpu_custom_call.1']
  %s0 = inlined_call_operand.hbm [shape: f32[8,32], index: 0, kind: input, shape index: {}]
  %s1 = inlined_call_operand.hbm [shape: f32[8,32], index: 1, kind: input, shape index: {}]
  %s2 = inlined_call_operand.hbm [shape: f32[2,32,32], index: 2, kind: input, shape index: {}]
  %s3 = inlined_call_operand.vmem [shape: f32[2,32], index: 3, kind: input, shape index: {}]
  %s4 = inlined_call_operand.<no memory space> [shape: f32[1], index: 4, kind: input, shape index: {}]
  %s5 = inlined_call_operand.hbm [shape: f32[1,8], index: 5, kind: output, shape index: {}]
  %s6 = sld [smem:[#allocation0]]
  $region42: #{tpu_custom_call.1} parent=0
    _
  %s8 = ssub.s32 1, %s6
  %s9 = scalar_select 0, %s8, %s6
  %10 = sst [smem:[#allocation2]] %s4
  $region1: #{tpu_custom_call.1} parent=0
    #allocation3 [shape = 'u8[4096]{0}', space=vmem, size = 0x1000, scoped, tag = 'input window, operand 0, single buffered']
    #allocation4 [shape = 's32[1]{0}', space=sflag, size = 0x4, scoped, tag = 'scoped memory for tpu_custom_call.1']
    #allocation5 [shape = 's32[1]{0}', space=sflag, size = 0x4, scoped, tag = 'scoped memory for tpu_custom_call.1']
    #allocation6 [shape = 'u8[4096]{0}', space=vmem, size = 0x1000, scoped, tag = 'input window, operand 1, single buffered']
    #allocation7 [shape = 's32[1]{0}', space=sflag, size = 0x4, scoped, tag = 'scoped memory for tpu_custom_call.1']
    #allocation8 [shape = 'u8[32768]{0}', space=vmem, size = 0x8000, scoped, tag = 'input window, operand 2, single buffered']
    #allocation9 [shape = 'u8[512]{0}', space=vmem, size = 0x400, scoped, tag = 'output window, operand 0, single buffered']
    %11 = vsyncpa [#allocation4], 0
    %12 = vsyncpa [#allocation7], 0
    %13 = vsyncpa [#allocation5], 0
    // Predicated region
    $region2: #{tpu_custom_call.1} parent=1 // pred_check
      _
    $region3: #{tpu_custom_call.1} parent=1 // pred_check_branch
      %15 = sbr.rel (0) target = $region5
    $region4: #{tpu_custom_call.1} parent=1 // pred_region
      %17 = vsyncadd [#allocation4], 0
      %s19 = sshll.u32 %s0, 4
      %s20 = int_to_ptr.hbm [resolvable:$true] %s19
      %s21 = sshll.u32 [#allocation3], 4
      %s22 = int_to_ptr.vmem [resolvable:$true] %s21
      %24 = dma.hbm_to_vmem [thread:$0]  %s20, 128, %s22, [#allocation4]
    $region5: #{tpu_custom_call.1} parent=1 // pred_fallthru
      _
    // Predicated region
    $region6: #{tpu_custom_call.1} parent=1 // pred_check
      _
    $region7: #{tpu_custom_call.1} parent=1 // pred_check_branch
      %26 = sbr.rel (0) target = $region9
    $region8: #{tpu_custom_call.1} parent=1 // pred_region
      %28 = vsyncadd [#allocation7], 0
      %s30 = sshll.u32 %s1, 4
      %s31 = int_to_ptr.hbm [resolvable:$true] %s30
      %s32 = sshll.u32 [#allocation6], 4
      %s33 = int_to_ptr.vmem [resolvable:$true] %s32
      %35 = dma.hbm_to_vmem [thread:$0]  %s31, 128, %s33, [#allocation7]
    $region9: #{tpu_custom_call.1} parent=1 // pred_fallthru
      _
    // Predicated region
    $region10: #{tpu_custom_call.1} parent=1 // pred_check
      _
    $region11: #{tpu_custom_call.1} parent=1 // pred_check_branch
      %37 = sbr.rel (0) target = $region13
    $region12: #{tpu_custom_call.1} parent=1 // pred_region
      %39 = vsyncadd [#allocation7], 0
      %s40 = sshll.u32 %s2, 4
      %s41 = int_to_ptr.hbm [resolvable:$true] %s40
      %s42 = sshll.u32 [#allocation8], 4
      %s43 = int_to_ptr.vmem [resolvable:$true] %s42
      %48 = dma.hbm_to_vmem [thread:$0]  %s41, 1024, %s43, [#allocation7], 128, 128, 8
    $region13: #{tpu_custom_call.1} parent=1 // pred_fallthru
      _
    // Predicated region
    $region14: #{tpu_custom_call.1} parent=1 // pred_check
      _
    $region15: #{tpu_custom_call.1} parent=1 // pred_check_branch
      %50 = sbr.rel (0) target = $region17
    $region16: #{tpu_custom_call.1} parent=1 // pred_region
      _
    $region17: #{tpu_custom_call.1} parent=1 // pred_fallthru
      _
    // Predicated region
    $region18: #{tpu_custom_call.1} parent=1 // pred_check
      _
    $region19: #{tpu_custom_call.1} parent=1 // pred_check_branch
      %52 = sbr.rel (0) target = $region21
    $region20: #{tpu_custom_call.1} parent=1 // pred_region
      _
    $region21: #{tpu_custom_call.1} parent=1 // pred_fallthru
      _
    // Predicated region
    $region22: #{tpu_custom_call.1} parent=1 // pred_check
      _
    $region23: #{tpu_custom_call.1} parent=1 // pred_check_branch
      %54 = sbr.rel (0) target = $region25
    $region24: #{tpu_custom_call.1} parent=1 // pred_region
      %56 = dma.done [#allocation4], 128
    $region25: #{tpu_custom_call.1} parent=1 // pred_fallthru
      _
    // Predicated region
    $region26: #{tpu_custom_call.1} parent=1 // pred_check
      _
    $region27: #{tpu_custom_call.1} parent=1 // pred_check_branch
      %58 = sbr.rel (0) target = $region29
    $region28: #{tpu_custom_call.1} parent=1 // pred_region
      %60 = dma.done [#allocation7], 128
    $region29: #{tpu_custom_call.1} parent=1 // pred_fallthru
      _
    // Predicated region
    $region30: #{tpu_custom_call.1} parent=1 // pred_check
      _
    $region31: #{tpu_custom_call.1} parent=1 // pred_check_branch
      %62 = sbr.rel (0) target = $region33
    $region32: #{tpu_custom_call.1} parent=1 // pred_region
      %64 = dma.done [#allocation7], 1024
    $region33: #{tpu_custom_call.1} parent=1 // pred_fallthru
      _
    %v65 = vld [vmem:[#allocation3] sm:$0xff]
    %v66 = vld [vmem:[#allocation6] sm:$0xff]
    %v67 = vmul.f32 %v65, %v66
    %v68 = vsub.f32 %v65, %v66
    %v69 = vand.u32 2147483647, %v68
    %v70 = vld [vmem:[#allocation8] sm:$0xff]
    %v71 = vld [vmem:[#allocation8 + $0x8] sm:$0xff]
    %v72 = vld [vmem:[#allocation8 + $0x10] sm:$0xff]
    %v73 = vld [vmem:[#allocation8 + $0x18] sm:$0xff]
    %s74 = scalar_lea.vmem [#allocation8], 32
    %v75 = vld [vmem:[%s74] sm:$0xff]
    %v76 = vld [vmem:[%s74 + $0x8] sm:$0xff]
    %v77 = vld [vmem:[%s74 + $0x10] sm:$0xff]
    %v78 = vld [vmem:[%s74 + $0x18] sm:$0xff]
    %vm79 = vcmask 261120
    %v81 = vsel %vm79, %v69, 0
    %83 = vmatpush.msra.mxu0 0.0
    %84 = vmatpush.msra.mxu0 0.0
    %85 = vmatpush.msra.mxu0 0.0
    %86 = vmatpush.msra.mxu0 0.0
    %87 = vmatpush.msra.mxu0 0.0
    %88 = vmatpush.msra.mxu0 0.0
    %89 = vmatpush.msra.mxu0 0.0
    %90 = vmatpush.msra.mxu0 0.0
    %91 = vmatpush.msra.mxu0 0.0
    %92 = vmatpush.msra.mxu0 0.0
    %93 = vmatpush.msra.mxu0 0.0
    %94 = vmatpush.msra.mxu0 0.0
    %95 = vmatpush.msra.mxu0 %v78
    %96 = vmatpush.msra.mxu0 %v77
    %97 = vmatpush.msra.mxu0 %v76
    %98 = vmatpush.msra.mxu0 %v75
    %99 = vmatmul.f32.gmra.mxu0 %v81
    %v100 = vpop.f32.mrf.mxu0
    %v101 = vadd.f32 0.0, %v100
    %102 = vdwg.mxu0
    %v104 = vsel %vm79, %v67, 0
    %106 = vmatpush.msra.mxu0 0.0
    %107 = vmatpush.msra.mxu0 0.0
    %108 = vmatpush.msra.mxu0 0.0
    %109 = vmatpush.msra.mxu0 0.0
    %110 = vmatpush.msra.mxu0 0.0
    %111 = vmatpush.msra.mxu0 0.0
    %112 = vmatpush.msra.mxu0 0.0
    %113 = vmatpush.msra.mxu0 0.0
    %114 = vmatpush.msra.mxu0 0.0
    %115 = vmatpush.msra.mxu0 0.0
    %116 = vmatpush.msra.mxu0 0.0
    %117 = vmatpush.msra.mxu0 0.0
    %118 = vmatpush.msra.mxu0 %v73
    %119 = vmatpush.msra.mxu0 %v72
    %120 = vmatpush.msra.mxu0 %v71
    %121 = vmatpush.msra.mxu0 %v70
    %122 = vmatmul.f32.gmra.mxu0 %v104
    %v123 = vpop.f32.mrf.mxu0
    %v124 = vadd.f32 %v101, %v123
    %125 = vdwg.mxu0
    %v126 = vld [vmem:[%s3] sm:$0x1]
    %v127 = vperm.slane %v126, 0
    %v128 = vadd.f32 %v124, %v127
    %v129 = vxor.u32 %v128, 2147483648
    %v130 = vmul.f32 %v129, 1.442695
    %v131 = vpow.pop %v130
    %v132 = vadd.f32 %v131, 1.0
    %v133 = vrcp.pop %v132
    %v134 = vmul.f32 %v132, %v133
    %v135 = vsub.f32 1.0, %v134
    %v136 = vmul.f32 %v133, %v135
    %v137 = vadd.f32 %v133, %v136
    %vm138 = vweird.f32 %v132
    %vm139 = vweird.f32 %v133
    %vm140 = vmor %vm138, %vm139
    %v141 = vsel %vm140, %v133, %v137
    %v142 = vand.u32 2147483647, %v132
    %vm143 = vcmp.eq.f32.partialorder %v142, 8.507059e+37
    %v144 = vand.u32 %v132, 2147483648
    %v145 = vor.u32 1.1754944e-38, %v144
    %v146 = vsel %vm143, %v145, %v141
    %v147 = vmul.f32 1.0, %v146
    %v148 = vld [vmem:[%s3 + $0x1] sm:$0x1]
    %v149 = vperm.slane %v148, 0
    %v150 = vmul.f32 %v147, %v149
    %v151 = vsel %vm79, %v150, 0.0
    %152 = vadd.xlane.f32.xlu0 %v151
    %v153 = vpop.xlane.xlu0 %152
    %s154 = sld [smem:[#allocation2]]
    %v155 = vstv %s154
    %v156 = vadd.f32 %v153, %v155
    %v157 = vxor.u32 %v156, 2147483648
    %v158 = vmul.f32 %v157, 1.442695
    %v159 = vpow.pop %v158
    %v160 = vadd.f32 %v159, 1.0
    %v161 = vrcp.pop %v160
    %v162 = vmul.f32 %v160, %v161
    %v163 = vsub.f32 1.0, %v162
    %v164 = vmul.f32 %v161, %v163
    %v165 = vadd.f32 %v161, %v164
    %vm166 = vweird.f32 %v160
    %vm167 = vweird.f32 %v161
    %vm168 = vmor %vm166, %vm167
    %v169 = vsel %vm168, %v161, %v165
    %v170 = vand.u32 2147483647, %v160
    %vm171 = vcmp.eq.f32.partialorder %v170, 8.507059e+37
    %v172 = vand.u32 %v160, 2147483648
    %v173 = vor.u32 1.1754944e-38, %v172
    %v174 = vsel %vm171, %v173, %v169
    %v175 = vmul.f32 1.0, %v174
    %v177 = vlaneseq
    %v178 = vand.u32 %v177, 127
    %v179 = vperm.slane %v175, %v178
    %vm181 = vcmask 57344
    %182 = vst.msk [vmem:[#allocation9] sm:$0x1] %vm181, %v179
    // Predicated region
    $region34: #{tpu_custom_call.1} parent=1 // pred_check
      _
    $region35: #{tpu_custom_call.1} parent=1 // pred_check_branch
      %184 = sbr.rel (0) target = $region37
    $region36: #{tpu_custom_call.1} parent=1 // pred_region
      %186 = vsyncadd [#allocation5], 0
      %s188 = sshll.u32 [#allocation9], 4
      %s189 = int_to_ptr.vmem [resolvable:$true] %s188
      %s190 = sshll.u32 %s5, 4
      %s191 = int_to_ptr.hbm [resolvable:$true] %s190
      %193 = dma.vmem_to_hbm [thread:$0]  %s189, 16, %s191, [#allocation5]
    $region37: #{tpu_custom_call.1} parent=1 // pred_fallthru
      _
    // Predicated region
    $region38: #{tpu_custom_call.1} parent=1 // pred_check
      _
    $region39: #{tpu_custom_call.1} parent=1 // pred_check_branch
      %195 = sbr.rel (0) target = $region41
    $region40: #{tpu_custom_call.1} parent=1 // pred_region
      %197 = dma.done [#allocation5], 16
    $region41: #{tpu_custom_call.1} parent=1 // pred_fallthru
      _
    %198 = vsyncpa [#allocation4], 1
    %199 = vsyncpa [#allocation7], 1
    %200 = vsyncpa [#allocation5], 1

</llo_original>
